<compile_context>
chip_gen: v7x
topology: tpu7x:2x2x1
jax: 0.10.0
libtpu: 0.0.40
codegen_flags: <defaults>
</compile_context>

<pallas_src>
import jax
import jax.numpy as jnp
from jax.experimental import pallas as pl
from jax.experimental.pallas import tpu as pltpu


def _linear_sigmoid_mask_kernel(x_ref, w_ref, mask_ref, b_ref, out_ref):
    # x_ref:    (TM, H)     f32 VMEM  (one row tile per grid step)
    # w_ref:    (1, H)      f32 VMEM  (pinned across grid steps)
    # mask_ref: (1, 1, TM)  f32 VMEM  (lane-dense)
    # b_ref:    (1,)        f32 SMEM  (scalar bias)
    # out_ref:  (1, 1, TM)  f32 VMEM  (lane-dense)
    x = x_ref[...]
    w = w_ref[...]                          # (1, H) broadcasts over the TM rows
    # This kernel is HBM-bandwidth-bound on streaming x; the N=1 "matmul" is done as a
    # VPU multiply + XLU lane-reduce (both off the critical path). Do NOT pad N to 128.
    h = jnp.sum(x * w, axis=1)              # (TM,)
    scores = jax.nn.sigmoid(h + b_ref[0])   # (TM,)
    out_ref[...] = (scores[None, None, :] * mask_ref[...]).astype(out_ref.dtype)


def _choose_tm(m_rows, h_dim):
    # Keep a double-buffered (TM, H) f32 x tile comfortably inside the scoped VMEM
    # limit on every generation (v5e default 16 MiB scoped, v7x 64 MiB physical):
    # target ~4 MiB per x buffer, TM a multiple of 128, capped at 1024 rows.
    tm = (4 * 1024 * 1024) // (h_dim * 4)
    tm = max(128, min(1024, (tm // 128) * 128))
    # Don't over-pad tiny inputs.
    tm = min(tm, pl.cdiv(m_rows, 128) * 128)
    return max(tm, 128)


def linear_forward(x, mask_cls, weight, bias):
    """Pallas implementation of Linear.forward: sigmoid(x @ W^T + b) * mask.

    x:        (B, S, H) float32
    mask_cls: (B, S)    any dtype (cast to float, matches mask_cls.float())
    weight:   (1, H)    float32   (PyTorch nn.Linear weight layout: [out, in])
    bias:     (1,)      float32
    returns:  (B, S)    float32
    """
    B, S, H = x.shape
    M = B * S
    tm = _choose_tm(M, H)
    num_tiles = pl.cdiv(M, tm)
    m_pad = num_tiles * tm

    x2 = x.reshape(M, H).astype(jnp.float32)
    mask1 = mask_cls.astype(jnp.float32).reshape(M)
    if m_pad != M:
        # Pad the ragged tail in the wrapper so every tile is full and stores stay
        # unmasked; padded rows are sliced off below (and masked to 0 anyway).
        x2 = jnp.pad(x2, ((0, m_pad - M), (0, 0)))
        mask1 = jnp.pad(mask1, (0, m_pad - M))
    mask3 = mask1.reshape(num_tiles, 1, tm)          # lane-dense mask layout
    w2 = weight.reshape(1, H).astype(jnp.float32)    # weight as a (1, H) row
    b2 = bias.reshape(1).astype(jnp.float32)         # scalar bias -> SMEM

    # TODO(synk): optionally stream x/w as bf16 on v6e/v7x for ~2x HBM throughput
    # (kept f32 here to match the reference numerics exactly).

    cost = pl.CostEstimate(
        flops=2 * m_pad * H,
        transcendentals=m_pad,
        bytes_accessed=m_pad * H * 4 + 2 * m_pad * 4 + H * 4 + 4,
    )

    out = pl.pallas_call(
        _linear_sigmoid_mask_kernel,
        out_shape=jax.ShapeDtypeStruct((num_tiles, 1, tm), jnp.float32),
        grid=(num_tiles,),
        in_specs=[
            pl.BlockSpec((tm, H), lambda i: (i, 0)),           # x row tile
            pl.BlockSpec((1, H), lambda i: (0, 0)),            # weight, VMEM-resident
            pl.BlockSpec((1, 1, tm), lambda i: (i, 0, 0)),     # lane-dense mask tile
            pl.BlockSpec(memory_space=pltpu.MemorySpace.SMEM),  # scalar bias
        ],
        out_specs=pl.BlockSpec((1, 1, tm), lambda i: (i, 0, 0)),
        compiler_params=pltpu.CompilerParams(
            dimension_semantics=("parallel",),       # megacore sharding on v7x
            vmem_limit_bytes=32 * 1024 * 1024,       # safe headroom on all generations
        ),
        cost_estimate=cost,
    )(x2, w2, mask3, b2)

    return out.reshape(m_pad)[:M].reshape(B, S)


if __name__ == "__main__":
    # Small shapes consistent with the module's forward: x [B, S, H], mask_cls [B, S]
    B, S, H = 2, 8, 32

    key = jax.random.PRNGKey(0)
    kx, kmask, kw, kb = jax.random.split(key, 4)

    x = jax.random.normal(kx, (B, S, H), dtype=jnp.float32)
    mask_cls = (jax.random.uniform(kmask, (B, S)) > 0.3).astype(jnp.int32)

    # Deterministic nn.Linear(H, 1)-style init: U(-1/sqrt(H), 1/sqrt(H))
    bound = 1.0 / (H ** 0.5)
    weight = jax.random.uniform(kw, (1, H), minval=-bound, maxval=bound,
                                dtype=jnp.float32)
    bias = jax.random.uniform(kb, (1,), minval=-bound, maxval=bound,
                              dtype=jnp.float32)

    sent_scores = linear_forward(x, mask_cls, weight, bias)
    jax.block_until_ready(sent_scores)

    # Pure-JAX reference (same semantics as the PyTorch forward), exact f32 reduce.
    ref = jax.nn.sigmoid(
        jnp.sum(x * weight[0], axis=-1) + bias[0]
    ) * mask_cls.astype(jnp.float32)
    assert sent_scores.shape == (B, S)
    assert jnp.allclose(sent_scores, ref, atol=1e-5, rtol=1e-5)

    print("KERNEL_OK")
</pallas_src>

<mosaic_0001>
module attributes {stable_mosaic.version = 11 : i64} {
  func.func @_linear_sigmoid_mask_kernel(%arg0: i32, %arg1: memref<128x32xf32, #tpu.memory_space<vmem>>, %arg2: memref<1x32xf32, #tpu.memory_space<vmem>>, %arg3: memref<1x1x128xf32, #tpu.memory_space<vmem>>, %arg4: memref<1xf32, #tpu.memory_space<smem>>, %arg5: memref<1x1x128xf32, #tpu.memory_space<vmem>>) attributes {dimension_semantics = [#tpu.dimension_semantics<parallel>], iteration_bounds = array<i64: 1>, scalar_prefetch = 0 : i64, scratch_operands = 0 : i64, tpu.core_type = #tpu.core_type<tc>, window_params = [{transform_indices = @transform_0, window_bounds = array<i64: 128, 32>}, {pipeline_mode = #tpu.pipeline_mode<synchronous>, transform_indices = @transform_1, window_bounds = array<i64: 1, 32>}, {transform_indices = @transform_2, window_bounds = array<i64: 1, 1, 128>}, {transform_indices = @transform_3, window_bounds = array<i64: 1>}, {transform_indices = @transform_4, window_bounds = array<i64: 1, 1, 128>}]} {
    %c0 = arith.constant 0 : index
    %c0_0 = arith.constant 0 : index
    %0 = vector.load %arg1[%c0, %c0_0] : memref<128x32xf32, #tpu.memory_space<vmem>>, vector<128x32xf32>
    %c0_1 = arith.constant 0 : index
    %c0_2 = arith.constant 0 : index
    %1 = vector.load %arg2[%c0_1, %c0_2] : memref<1x32xf32, #tpu.memory_space<vmem>>, vector<1x32xf32>
    %2 = vector.broadcast %1 : vector<1x32xf32> to vector<128x32xf32>
    %3 = arith.mulf %0, %2 : vector<128x32xf32>
    %cst = arith.constant dense<0.000000e+00> : vector<128xf32>
    %4 = vector.multi_reduction <add>, %3, %cst [1] : vector<128x32xf32> to vector<128xf32>
    %c0_3 = arith.constant 0 : index
    %5 = memref.load %arg4[%c0_3] : memref<1xf32, #tpu.memory_space<smem>>
    %6 = vector.broadcast %5 : f32 to vector<128xf32>
    %7 = arith.addf %4, %6 : vector<128xf32>
    %8 = arith.negf %7 : vector<128xf32>
    %9 = math.exp %8 : vector<128xf32>
    %cst_4 = arith.constant 1.000000e+00 : f32
    %10 = vector.broadcast %cst_4 : f32 to vector<128xf32>
    %11 = arith.addf %10, %9 : vector<128xf32>
    %12 = arith.divf %10, %11 : vector<128xf32>
    %13 = vector.shape_cast %12 : vector<128xf32> to vector<1x1x128xf32>
    %c0_5 = arith.constant 0 : index
    %c0_6 = arith.constant 0 : index
    %c0_7 = arith.constant 0 : index
    %14 = vector.load %arg3[%c0_5, %c0_6, %c0_7] : memref<1x1x128xf32, #tpu.memory_space<vmem>>, vector<1x1x128xf32>
    %15 = arith.mulf %13, %14 : vector<1x1x128xf32>
    %c0_8 = arith.constant 0 : index
    %c0_9 = arith.constant 0 : index
    %c0_10 = arith.constant 0 : index
    %16 = vector.load %arg5[%c0_8, %c0_9, %c0_10] : memref<1x1x128xf32, #tpu.memory_space<vmem>>, vector<1x1x128xf32>
    tpu.vector_store %arg5[%c0_8, %c0_9, %c0_10], %15 {strides = array<i32>} : memref<1x1x128xf32, #tpu.memory_space<vmem>>, vector<1x1x128xf32>,
    return
  }
  func.func @transform_0(%arg0: i32) -> (i32, i32) {
    %c0_i32 = arith.constant 0 : i32
    %c0_i32_0 = arith.constant 0 : i32
    return %arg0, %c0_i32 : i32, i32
  }
  func.func @transform_1(%arg0: i32) -> (i32, i32) {
    %c0_i32 = arith.constant 0 : i32
    %c0_i32_0 = arith.constant 0 : i32
    %c0_i32_1 = arith.constant 0 : i32
    return %c0_i32, %c0_i32_0 : i32, i32
  }
  func.func @transform_2(%arg0: i32) -> (i32, i32, i32) {
    %c0_i32 = arith.constant 0 : i32
    %c0_i32_0 = arith.constant 0 : i32
    %c0_i32_1 = arith.constant 0 : i32
    return %arg0, %c0_i32, %c0_i32_0 : i32, i32, i32
  }
  func.func @transform_3(%arg0: i32) -> i32 {
    %c0_i32 = arith.constant 0 : i32
    %c0_i32_0 = arith.constant 0 : i32
    return %c0_i32 : i32
  }
  func.func @transform_4(%arg0: i32) -> (i32, i32, i32) {
    %c0_i32 = arith.constant 0 : i32
    %c0_i32_0 = arith.constant 0 : i32
    %c0_i32_1 = arith.constant 0 : i32
    return %arg0, %c0_i32, %c0_i32_0 : i32, i32, i32
  }
}

</mosaic_0001>

<llo_original>
// kernel: tpu_custom_call.1
$region0: #{tpu_custom_call.1}
  #allocation0 [shape = 'u32[]', space=smem, size = 0x4, offset = 0x4, fixed_abs, tag = 'smem constant byte address 0x4 - core index']
  #allocation1 [shape = 'u32[144,128]{1,0:T(1,128)}', space=vmem, size = 0x12000, scoped, tag = 'internal scratch']
  #allocation2 [shape = 'f32[1]{0:T(128)S(6)}', space=smem, size = 0x200, scoped, tag = 'scoped memory for tpu_custom_call.1']
  %s0 = inlined_call_operand.vmem [shape: f32[128,32], index: 0, kind: input, shape index: {}]
  %s1 = inlined_call_operand.vmem [shape: f32[1,32], index: 1, kind: input, shape index: {}]
  %s2 = inlined_call_operand.vmem [shape: f32[1,1,128], index: 2, kind: input, shape index: {}]
  %s3 = inlined_call_operand.<no memory space> [shape: f32[1], index: 3, kind: input, shape index: {}]
  %s4 = inlined_call_operand.hbm [shape: f32[1,1,128], index: 4, kind: output, shape index: {}]
  %s5 = sld [smem:[#allocation0]]
  $region26: #{tpu_custom_call.1} parent=0
    _
  %s7 = ssub.s32 1, %s5
  %s8 = scalar_select 0, %s7, %s5
  %9 = sst [smem:[#allocation2]] %s3
  $region1: #{tpu_custom_call.1} parent=0
    #allocation3 [shape = 'u8[512]{0}', space=vmem, size = 0x400, scoped, tag = 'output window, operand 0, single buffered']
    #allocation4 [shape = 's32[1]{0}', space=sflag, size = 0x4, scoped, tag = 'scoped memory for tpu_custom_call.1']
    %10 = vsyncpa [#allocation4], 0
    // Predicated region
    $region2: #{tpu_custom_call.1} parent=1 // pred_check
      _
    $region3: #{tpu_custom_call.1} parent=1 // pred_check_branch
      %12 = sbr.rel (0) target = $region5
    $region4: #{tpu_custom_call.1} parent=1 // pred_region
      _
    $region5: #{tpu_custom_call.1} parent=1 // pred_fallthru
      _
    // Predicated region
    $region6: #{tpu_custom_call.1} parent=1 // pred_check
      _
    $region7: #{tpu_custom_call.1} parent=1 // pred_check_branch
      %14 = sbr.rel (0) target = $region9
    $region8: #{tpu_custom_call.1} parent=1 // pred_region
      _
    $region9: #{tpu_custom_call.1} parent=1 // pred_fallthru
      _
    // Predicated region
    $region10: #{tpu_custom_call.1} parent=1 // pred_check
      _
    $region11: #{tpu_custom_call.1} parent=1 // pred_check_branch
      %16 = sbr.rel (0) target = $region13
    $region12: #{tpu_custom_call.1} parent=1 // pred_region
      _
    $region13: #{tpu_custom_call.1} parent=1 // pred_fallthru
      _
    // Predicated region
    $region14: #{tpu_custom_call.1} parent=1 // pred_check
      _
    $region15: #{tpu_custom_call.1} parent=1 // pred_check_branch
      %18 = sbr.rel (0) target = $region17
    $region16: #{tpu_custom_call.1} parent=1 // pred_region
      _
    $region17: #{tpu_custom_call.1} parent=1 // pred_fallthru
      _
    %v19 = vld [vmem:[%s0] sm:$0xff]
    %v20 = vld [vmem:[%s0 + $0x8] sm:$0xff]
    %v21 = vld [vmem:[%s0 + $0x10] sm:$0xff]
    %v22 = vld [vmem:[%s0 + $0x18] sm:$0xff]
    %v23 = vld [vmem:[%s0 + $0x20] sm:$0xff]
    %v24 = vld [vmem:[%s0 + $0x28] sm:$0xff]
    %v25 = vld [vmem:[%s0 + $0x30] sm:$0xff]
    %v26 = vld [vmem:[%s0 + $0x38] sm:$0xff]
    %v27 = vld [vmem:[%s0 + $0x40] sm:$0xff]
    %v28 = vld [vmem:[%s0 + $0x48] sm:$0xff]
    %v29 = vld [vmem:[%s0 + $0x50] sm:$0xff]
    %v30 = vld [vmem:[%s0 + $0x58] sm:$0xff]
    %v31 = vld [vmem:[%s0 + $0x60] sm:$0xff]
    %v32 = vld [vmem:[%s0 + $0x68] sm:$0xff]
    %v33 = vld [vmem:[%s0 + $0x70] sm:$0xff]
    %v34 = vld [vmem:[%s0 + $0x78] sm:$0xff]
    %v35 = vld [vmem:[%s1] sm:$0x1]
    %v37 = vlaneseq
    %v38 = vshrl.u32 %v37, 7
    %v39 = vsub.s32 0, %v38
    %v40 = vrot.slane %v35, %v39
    %v42 = vmul.f32 %v19, %v40
    %v43 = vmul.f32 %v20, %v40
    %v44 = vmul.f32 %v21, %v40
    %v45 = vmul.f32 %v22, %v40
    %v46 = vmul.f32 %v23, %v40
    %v47 = vmul.f32 %v24, %v40
    %v48 = vmul.f32 %v25, %v40
    %v49 = vmul.f32 %v26, %v40
    %v50 = vmul.f32 %v27, %v40
    %v51 = vmul.f32 %v28, %v40
    %v52 = vmul.f32 %v29, %v40
    %v53 = vmul.f32 %v30, %v40
    %v54 = vmul.f32 %v31, %v40
    %v55 = vmul.f32 %v32, %v40
    %v56 = vmul.f32 %v33, %v40
    %v57 = vmul.f32 %v34, %v40
    %vm58 = vcmask 261120
    %v59 = vsel %vm58, %v42, 0.0
    %60 = vadd.xlane.f32.xlu0 %v59
    %v61 = vpop.xlane.xlu0 %60
    %v62 = vsel %vm58, %v43, 0.0
    %63 = vadd.xlane.f32.xlu0 %v62
    %v64 = vpop.xlane.xlu0 %63
    %v65 = vsel %vm58, %v44, 0.0
    %66 = vadd.xlane.f32.xlu0 %v65
    %v67 = vpop.xlane.xlu0 %66
    %v68 = vsel %vm58, %v45, 0.0
    %69 = vadd.xlane.f32.xlu0 %v68
    %v70 = vpop.xlane.xlu0 %69
    %v71 = vsel %vm58, %v46, 0.0
    %72 = vadd.xlane.f32.xlu0 %v71
    %v73 = vpop.xlane.xlu0 %72
    %v74 = vsel %vm58, %v47, 0.0
    %75 = vadd.xlane.f32.xlu0 %v74
    %v76 = vpop.xlane.xlu0 %75
    %v77 = vsel %vm58, %v48, 0.0
    %78 = vadd.xlane.f32.xlu0 %v77
    %v79 = vpop.xlane.xlu0 %78
    %v80 = vsel %vm58, %v49, 0.0
    %81 = vadd.xlane.f32.xlu0 %v80
    %v82 = vpop.xlane.xlu0 %81
    %v83 = vsel %vm58, %v50, 0.0
    %84 = vadd.xlane.f32.xlu0 %v83
    %v85 = vpop.xlane.xlu0 %84
    %v86 = vsel %vm58, %v51, 0.0
    %87 = vadd.xlane.f32.xlu0 %v86
    %v88 = vpop.xlane.xlu0 %87
    %v89 = vsel %vm58, %v52, 0.0
    %90 = vadd.xlane.f32.xlu0 %v89
    %v91 = vpop.xlane.xlu0 %90
    %v92 = vsel %vm58, %v53, 0.0
    %93 = vadd.xlane.f32.xlu0 %v92
    %v94 = vpop.xlane.xlu0 %93
    %v95 = vsel %vm58, %v54, 0.0
    %96 = vadd.xlane.f32.xlu0 %v95
    %v97 = vpop.xlane.xlu0 %96
    %v98 = vsel %vm58, %v55, 0.0
    %99 = vadd.xlane.f32.xlu0 %v98
    %v100 = vpop.xlane.xlu0 %99
    %v101 = vsel %vm58, %v56, 0.0
    %102 = vadd.xlane.f32.xlu0 %v101
    %v103 = vpop.xlane.xlu0 %102
    %v104 = vsel %vm58, %v57, 0.0
    %105 = vadd.xlane.f32.xlu0 %v104
    %v106 = vpop.xlane.xlu0 %105
    %s107 = sld [smem:[#allocation2]]
    %v108 = vstv %s107
    %v109 = vadd.f32 %v61, %v108
    %v110 = vadd.f32 %v64, %v108
    %v111 = vadd.f32 %v67, %v108
    %v112 = vadd.f32 %v70, %v108
    %v113 = vadd.f32 %v73, %v108
    %v114 = vadd.f32 %v76, %v108
    %v115 = vadd.f32 %v79, %v108
    %v116 = vadd.f32 %v82, %v108
    %v117 = vadd.f32 %v85, %v108
    %v118 = vadd.f32 %v88, %v108
    %v119 = vadd.f32 %v91, %v108
    %v120 = vadd.f32 %v94, %v108
    %v121 = vadd.f32 %v97, %v108
    %v122 = vadd.f32 %v100, %v108
    %v123 = vadd.f32 %v103, %v108
    %v124 = vadd.f32 %v106, %v108
    %v125 = vxor.u32 %v109, 2147483648
    %v126 = vxor.u32 %v110, 2147483648
    %v127 = vxor.u32 %v111, 2147483648
    %v128 = vxor.u32 %v112, 2147483648
    %v129 = vxor.u32 %v113, 2147483648
    %v130 = vxor.u32 %v114, 2147483648
    %v131 = vxor.u32 %v115, 2147483648
    %v132 = vxor.u32 %v116, 2147483648
    %v133 = vxor.u32 %v117, 2147483648
    %v134 = vxor.u32 %v118, 2147483648
    %v135 = vxor.u32 %v119, 2147483648
    %v136 = vxor.u32 %v120, 2147483648
    %v137 = vxor.u32 %v121, 2147483648
    %v138 = vxor.u32 %v122, 2147483648
    %v139 = vxor.u32 %v123, 2147483648
    %v140 = vxor.u32 %v124, 2147483648
    %v141 = vmul.f32 %v125, 1.442695
    %v142 = vpow.pop %v141
    %v143 = vmul.f32 %v126, 1.442695
    %v144 = vpow.pop %v143
    %v145 = vmul.f32 %v127, 1.442695
    %v146 = vpow.pop %v145
    %v147 = vmul.f32 %v128, 1.442695
    %v148 = vpow.pop %v147
    %v149 = vmul.f32 %v129, 1.442695
    %v150 = vpow.pop %v149
    %v151 = vmul.f32 %v130, 1.442695
    %v152 = vpow.pop %v151
    %v153 = vmul.f32 %v131, 1.442695
    %v154 = vpow.pop %v153
    %v155 = vmul.f32 %v132, 1.442695
    %v156 = vpow.pop %v155
    %v157 = vmul.f32 %v133, 1.442695
    %v158 = vpow.pop %v157
    %v159 = vmul.f32 %v134, 1.442695
    %v160 = vpow.pop %v159
    %v161 = vmul.f32 %v135, 1.442695
    %v162 = vpow.pop %v161
    %v163 = vmul.f32 %v136, 1.442695
    %v164 = vpow.pop %v163
    %v165 = vmul.f32 %v137, 1.442695
    %v166 = vpow.pop %v165
    %v167 = vmul.f32 %v138, 1.442695
    %v168 = vpow.pop %v167
    %v169 = vmul.f32 %v139, 1.442695
    %v170 = vpow.pop %v169
    %v171 = vmul.f32 %v140, 1.442695
    %v172 = vpow.pop %v171
    %v173 = vadd.f32 %v142, 1.0
    %v174 = vadd.f32 %v144, 1.0
    %v175 = vadd.f32 %v146, 1.0
    %v176 = vadd.f32 %v148, 1.0
    %v177 = vadd.f32 %v150, 1.0
    %v178 = vadd.f32 %v152, 1.0
    %v179 = vadd.f32 %v154, 1.0
    %v180 = vadd.f32 %v156, 1.0
    %v181 = vadd.f32 %v158, 1.0
    %v182 = vadd.f32 %v160, 1.0
    %v183 = vadd.f32 %v162, 1.0
    %v184 = vadd.f32 %v164, 1.0
    %v185 = vadd.f32 %v166, 1.0
    %v186 = vadd.f32 %v168, 1.0
    %v187 = vadd.f32 %v170, 1.0
    %v188 = vadd.f32 %v172, 1.0
    %v189 = vrcp.pop %v173
    %v190 = vmul.f32 1.0, %v189
    %v191 = vrcp.pop %v174
    %v192 = vmul.f32 1.0, %v191
    %v193 = vrcp.pop %v175
    %v194 = vmul.f32 1.0, %v193
    %v195 = vrcp.pop %v176
    %v196 = vmul.f32 1.0, %v195
    %v197 = vrcp.pop %v177
    %v198 = vmul.f32 1.0, %v197
    %v199 = vrcp.pop %v178
    %v200 = vmul.f32 1.0, %v199
    %v201 = vrcp.pop %v179
    %v202 = vmul.f32 1.0, %v201
    %v203 = vrcp.pop %v180
    %v204 = vmul.f32 1.0, %v203
    %v205 = vrcp.pop %v181
    %v206 = vmul.f32 1.0, %v205
    %v207 = vrcp.pop %v182
    %v208 = vmul.f32 1.0, %v207
    %v209 = vrcp.pop %v183
    %v210 = vmul.f32 1.0, %v209
    %v211 = vrcp.pop %v184
    %v212 = vmul.f32 1.0, %v211
    %v213 = vrcp.pop %v185
    %v214 = vmul.f32 1.0, %v213
    %v215 = vrcp.pop %v186
    %v216 = vmul.f32 1.0, %v215
    %v217 = vrcp.pop %v187
    %v218 = vmul.f32 1.0, %v217
    %v219 = vrcp.pop %v188
    %v220 = vmul.f32 1.0, %v219
    %v221 = vld [vmem:[%s2] sm:$0x1]
    %v223 = vlaneseq
    %v224 = vshrl.u32 %v223, 7
    %v225 = vsub.s32 0, %v224
    %v226 = vrot.slane %v221, %v225
    %228 = vbcast.lane.b32.xlu0 %v226, 256
    %v229 = vpop.permute.xlu0 %228
    %s231 = sor.u32 256, 8
    %232 = vbcast.lane.b32.xlu0 %v226, %s231
    %v233 = vpop.permute.xlu0 %232
    %s235 = sor.u32 256, 16
    %236 = vbcast.lane.b32.xlu0 %v226, %s235
    %v237 = vpop.permute.xlu0 %236
    %s239 = sor.u32 256, 24
    %240 = vbcast.lane.b32.xlu0 %v226, %s239
    %v241 = vpop.permute.xlu0 %240
    %s243 = sor.u32 256, 32
    %244 = vbcast.lane.b32.xlu0 %v226, %s243
    %v245 = vpop.permute.xlu0 %244
    %s247 = sor.u32 256, 40
    %248 = vbcast.lane.b32.xlu0 %v226, %s247
    %v249 = vpop.permute.xlu0 %248
    %s251 = sor.u32 256, 48
    %252 = vbcast.lane.b32.xlu0 %v226, %s251
    %v253 = vpop.permute.xlu0 %252
    %s255 = sor.u32 256, 56
    %256 = vbcast.lane.b32.xlu0 %v226, %s255
    %v257 = vpop.permute.xlu0 %256
    %s259 = sor.u32 256, 64
    %260 = vbcast.lane.b32.xlu0 %v226, %s259
    %v261 = vpop.permute.xlu0 %260
    %s263 = sor.u32 256, 72
    %264 = vbcast.lane.b32.xlu0 %v226, %s263
    %v265 = vpop.permute.xlu0 %264
    %s267 = sor.u32 256, 80
    %268 = vbcast.lane.b32.xlu0 %v226, %s267
    %v269 = vpop.permute.xlu0 %268
    %s271 = sor.u32 256, 88
    %272 = vbcast.lane.b32.xlu0 %v226, %s271
    %v273 = vpop.permute.xlu0 %272
    %s275 = sor.u32 256, 96
    %276 = vbcast.lane.b32.xlu0 %v226, %s275
    %v277 = vpop.permute.xlu0 %276
    %s279 = sor.u32 256, 104
    %280 = vbcast.lane.b32.xlu0 %v226, %s279
    %v281 = vpop.permute.xlu0 %280
    %s283 = sor.u32 256, 112
    %284 = vbcast.lane.b32.xlu0 %v226, %s283
    %v285 = vpop.permute.xlu0 %284
    %s287 = sor.u32 256, 120
    %288 = vbcast.lane.b32.xlu0 %v226, %s287
    %v289 = vpop.permute.xlu0 %288
    %v306 = vmul.f32 %v190, %v229
    %v307 = vmul.f32 %v192, %v233
    %v308 = vmul.f32 %v194, %v237
    %v309 = vmul.f32 %v196, %v241
    %v310 = vmul.f32 %v198, %v245
    %v311 = vmul.f32 %v200, %v249
    %v312 = vmul.f32 %v202, %v253
    %v313 = vmul.f32 %v204, %v257
    %v314 = vmul.f32 %v206, %v261
    %v315 = vmul.f32 %v208, %v265
    %v316 = vmul.f32 %v210, %v269
    %v317 = vmul.f32 %v212, %v273
    %v318 = vmul.f32 %v214, %v277
    %v319 = vmul.f32 %v216, %v281
    %v320 = vmul.f32 %v218, %v285
    %v321 = vmul.f32 %v220, %v289
    %338 = vset.pattern.permute.xlu0 0
    %339 = vperm.xlu0 %338, %v306
    %v340 = vpop.permute.xlu0 %339
    %341 = vset.pattern.permute.xlu0 0
    %342 = vperm.xlu0 %341, %v307
    %v343 = vpop.permute.xlu0 %342
    %344 = vset.pattern.permute.xlu0 0
    %345 = vperm.xlu0 %344, %v308
    %v346 = vpop.permute.xlu0 %345
    %347 = vset.pattern.permute.xlu0 0
    %348 = vperm.xlu0 %347, %v309
    %v349 = vpop.permute.xlu0 %348
    %350 = vset.pattern.permute.xlu0 0
    %351 = vperm.xlu0 %350, %v310
    %v352 = vpop.permute.xlu0 %351
    %353 = vset.pattern.permute.xlu0 0
    %354 = vperm.xlu0 %353, %v311
    %v355 = vpop.permute.xlu0 %354
    %356 = vset.pattern.permute.xlu0 0
    %357 = vperm.xlu0 %356, %v312
    %v358 = vpop.permute.xlu0 %357
    %359 = vset.pattern.permute.xlu0 0
    %360 = vperm.xlu0 %359, %v313
    %v361 = vpop.permute.xlu0 %360
    %362 = vset.pattern.permute.xlu0 0
    %363 = vperm.xlu0 %362, %v314
    %v364 = vpop.permute.xlu0 %363
    %365 = vset.pattern.permute.xlu0 0
    %366 = vperm.xlu0 %365, %v315
    %v367 = vpop.permute.xlu0 %366
    %368 = vset.pattern.permute.xlu0 0
    %369 = vperm.xlu0 %368, %v316
    %v370 = vpop.permute.xlu0 %369
    %371 = vset.pattern.permute.xlu0 0
    %372 = vperm.xlu0 %371, %v317
    %v373 = vpop.permute.xlu0 %372
    %374 = vset.pattern.permute.xlu0 0
    %375 = vperm.xlu0 %374, %v318
    %v376 = vpop.permute.xlu0 %375
    %377 = vset.pattern.permute.xlu0 0
    %378 = vperm.xlu0 %377, %v319
    %v379 = vpop.permute.xlu0 %378
    %380 = vset.pattern.permute.xlu0 0
    %381 = vperm.xlu0 %380, %v320
    %v382 = vpop.permute.xlu0 %381
    %383 = vset.pattern.permute.xlu0 0
    %384 = vperm.xlu0 %383, %v321
    %v385 = vpop.permute.xlu0 %384
    %v386 = vlaneseq
    %v387 = vand.u32 %v386, 127
    %v388 = vlaneseq
    %v389 = vshrl.u32 %v388, 7
    %v390 = vsub.s32 %v387, %v389
    %v391 = vrot.slane %v340, %v390
    %v392 = vadd.s32 %v387, 4294967288
    %v393 = vlaneseq
    %v394 = vshrl.u32 %v393, 7
    %v395 = vsub.s32 %v392, %v394
    %v396 = vrot.slane %v343, %v395
    %vm397 = vcmask 130112
    %v398 = vsel %vm397, %v396, %v391
    %v399 = vadd.s32 %v387, 4294967280
    %v400 = vlaneseq
    %v401 = vshrl.u32 %v400, 7
    %v402 = vsub.s32 %v399, %v401
    %v403 = vrot.slane %v346, %v402
    %vm404 = vcmask 195712
    %v405 = vsel %vm404, %v403, %v398
    %v406 = vadd.s32 %v387, 4294967272
    %v407 = vlaneseq
    %v408 = vshrl.u32 %v407, 7
    %v409 = vsub.s32 %v406, %v408
    %v410 = vrot.slane %v349, %v409
    %vm411 = vcmask 261312
    %v412 = vsel %vm411, %v410, %v405
    %v413 = vadd.s32 %v387, 4294967264
    %v414 = vlaneseq
    %v415 = vshrl.u32 %v414, 7
    %v416 = vsub.s32 %v413, %v415
    %v417 = vrot.slane %v352, %v416
    %vm418 = vcmask 326912
    %v419 = vsel %vm418, %v417, %v412
    %v420 = vadd.s32 %v387, 4294967256
    %v421 = vlaneseq
    %v422 = vshrl.u32 %v421, 7
    %v423 = vsub.s32 %v420, %v422
    %v424 = vrot.slane %v355, %v423
    %vm425 = vcmask 392512
    %v426 = vsel %vm425, %v424, %v419
    %v427 = vadd.s32 %v387, 4294967248
    %v428 = vlaneseq
    %v429 = vshrl.u32 %v428, 7
    %v430 = vsub.s32 %v427, %v429
    %v431 = vrot.slane %v358, %v430
    %vm432 = vcmask 458112
    %v433 = vsel %vm432, %v431, %v426
    %v434 = vadd.s32 %v387, 4294967240
    %v435 = vlaneseq
    %v436 = vshrl.u32 %v435, 7
    %v437 = vsub.s32 %v434, %v436
    %v438 = vrot.slane %v361, %v437
    %vm439 = vcmask 523712
    %v440 = vsel %vm439, %v438, %v433
    %v441 = vadd.s32 %v387, 4294967232
    %v442 = vlaneseq
    %v443 = vshrl.u32 %v442, 7
    %v444 = vsub.s32 %v441, %v443
    %v445 = vrot.slane %v364, %v444
    %vm446 = vcmask 589312
    %v447 = vsel %vm446, %v445, %v440
    %v448 = vadd.s32 %v387, 4294967224
    %v449 = vlaneseq
    %v450 = vshrl.u32 %v449, 7
    %v451 = vsub.s32 %v448, %v450
    %v452 = vrot.slane %v367, %v451
    %vm453 = vcmask 654912
    %v454 = vsel %vm453, %v452, %v447
    %v455 = vadd.s32 %v387, 4294967216
    %v456 = vlaneseq
    %v457 = vshrl.u32 %v456, 7
    %v458 = vsub.s32 %v455, %v457
    %v459 = vrot.slane %v370, %v458
    %vm460 = vcmask 720512
    %v461 = vsel %vm460, %v459, %v454
    %v462 = vadd.s32 %v387, 4294967208
    %v463 = vlaneseq
    %v464 = vshrl.u32 %v463, 7
    %v465 = vsub.s32 %v462, %v464
    %v466 = vrot.slane %v373, %v465
    %vm467 = vcmask 786112
    %v468 = vsel %vm467, %v466, %v461
    %v469 = vadd.s32 %v387, 4294967200
    %v470 = vlaneseq
    %v471 = vshrl.u32 %v470, 7
    %v472 = vsub.s32 %v469, %v471
    %v473 = vrot.slane %v376, %v472
    %vm474 = vcmask 851712
    %v475 = vsel %vm474, %v473, %v468
    %v476 = vadd.s32 %v387, 4294967192
    %v477 = vlaneseq
    %v478 = vshrl.u32 %v477, 7
    %v479 = vsub.s32 %v476, %v478
    %v480 = vrot.slane %v379, %v479
    %vm481 = vcmask 917312
    %v482 = vsel %vm481, %v480, %v475
    %v483 = vadd.s32 %v387, 4294967184
    %v484 = vlaneseq
    %v485 = vshrl.u32 %v484, 7
    %v486 = vsub.s32 %v483, %v485
    %v487 = vrot.slane %v382, %v486
    %vm488 = vcmask 982912
    %v489 = vsel %vm488, %v487, %v482
    %v490 = vadd.s32 %v387, 4294967176
    %v491 = vlaneseq
    %v492 = vshrl.u32 %v491, 7
    %v493 = vsub.s32 %v490, %v492
    %v494 = vrot.slane %v385, %v493
    %vm495 = vcmask 1048512
    %v496 = vsel %vm495, %v494, %v489
    %498 = vst [vmem:[#allocation3] sm:$0x1] %v496
    // Predicated region
    $region18: #{tpu_custom_call.1} parent=1 // pred_check
      _
    $region19: #{tpu_custom_call.1} parent=1 // pred_check_branch
      %500 = sbr.rel (0) target = $region21
    $region20: #{tpu_custom_call.1} parent=1 // pred_region
      %s502 = ssub.s32 16, 16
      %503 = vsyncadd [#allocation4], %s502
      %s505 = sshll.u32 [#allocation3], 4
      %s506 = int_to_ptr.vmem [resolvable:$true] %s505
      %508 = dma.vmem_to_hbm [thread:$0]  %s506, 16, %s4, [#allocation4]
    $region21: #{tpu_custom_call.1} parent=1 // pred_fallthru
      _
    // Predicated region
    $region22: #{tpu_custom_call.1} parent=1 // pred_check
      _
    $region23: #{tpu_custom_call.1} parent=1 // pred_check_branch
      %510 = sbr.rel (0) target = $region25
    $region24: #{tpu_custom_call.1} parent=1 // pred_region
      %511 = dma.done [#allocation4], 16
    $region25: #{tpu_custom_call.1} parent=1 // pred_fallthru
      _
    %512 = vsyncpa [#allocation4], 1

</llo_original>
